<compile_context>
chip_gen: v7x
topology: tpu7x:2x2x1
jax: 0.10.0
libtpu: 0.0.40
codegen_flags: <defaults>
</compile_context>

<pallas_src>
import jax
import jax.numpy as jnp
from jax.experimental import pallas as pl
from jax.experimental.pallas import tpu as pltpu


def critic_kernel(x_ref, w1_ref, b1_ref, w2_ref, b2_ref, w3_ref, b3_ref, o_ref):
    # Layer 1: single fused matmul over the concatenated [state, action] tile.
    h1 = (jnp.dot(x_ref[...], w1_ref[...], preferred_element_type=jnp.float32)
          + b1_ref[...])
    h1 = jnp.maximum(h1, 0.0).astype(w2_ref.dtype)            # (TM, H)

    # Layer 2.
    h2 = jnp.dot(h1, w2_ref[...], preferred_element_type=jnp.float32) + b2_ref[...]
    h2 = jnp.maximum(h2, 0.0)                                  # (TM, H) f32

    # Layer 3 (out_features == 1): VPU multiply + XLU lane reduce instead of an
    # N=1 MXU matmul; b3 is a scalar read from SMEM.
    v = jnp.sum(h2 * w3_ref[...].astype(jnp.float32), axis=-1, keepdims=True)
    o_ref[...] = (v + b3_ref[0]).astype(o_ref.dtype)           # (TM, 1)


def _round_up(x, m):
    return ((x + m - 1) // m) * m


def critic_forward(state, action, params, *, tm=2048):
    """Mirrors Critic.forward: unsqueeze 1D inputs, concat, 3-layer MLP."""
    if state.ndim == 1:
        state = state[None, :]
    if action.ndim == 1:
        action = action[None, :]
    assert state.ndim == 2 and action.ndim == 2, "State and action must be 2D tensors"

    w1, b1, w2, b2, w3, b3 = params
    compute_dtype = w1.dtype                       # f32 or bf16
    itemsize = jnp.dtype(compute_dtype).itemsize
    sub = 8 * max(1, 4 // itemsize)                # packed sublane multiple: 8 f32, 16 bf16

    B, Ds = state.shape
    Da = action.shape[1]
    D_in = Ds + Da
    H = w2.shape[0]
    assert w1.shape == (D_in, H)

    # Single wrapper-side concat; layer 1 becomes one matmul in the kernel.
    x = jnp.concatenate(
        [state.astype(compute_dtype), action.astype(compute_dtype)], axis=1)

    # Tile selection: amortize per-step overhead with big tiles, keep TM a
    # multiple of the packed-sublane size, force >= 2 grid steps on
    # medium/large batches (v7x megacore), and keep padding <= one sublane
    # group per tile by deriving TM from ceil(B/n_tiles).
    B8 = _round_up(B, sub)
    tm_cap = max(sub, (tm // sub) * sub)
    n_tiles = max(1, pl.cdiv(B8, tm_cap))
    if n_tiles == 1 and B8 >= 64:
        n_tiles = 2
    TM = _round_up(pl.cdiv(B8, n_tiles), sub)
    B_pad = n_tiles * TM
    if B_pad != B:
        x = jnp.pad(x, ((0, B_pad - B), (0, 0)))

    # Explicit VMEM budget: double-buffered activation/output tiles, resident
    # weights, and f32 (TM, H) intermediates. Sized to stay well inside v7x's
    # 64 MiB physical VMEM even at large TM.
    est_bytes = (2 * TM * D_in * itemsize                       # input tiles (x2 buf)
                 + (D_in * H + H * H + 3 * H) * itemsize        # resident weights
                 + 2 * TM * 4                                   # output tiles (x2 buf)
                 + 3 * TM * H * 4)                              # h1/h2 intermediates
    vmem_limit = int(min(48 * 2**20, max(16 * 2**20, 2 * est_bytes)))

    out = pl.pallas_call(
        critic_kernel,
        out_shape=jax.ShapeDtypeStruct((B_pad, 1), jnp.float32),
        grid=(n_tiles,),
        in_specs=[
            pl.BlockSpec((TM, D_in), lambda i: (i, 0)),          # [state|action] tile
            pl.BlockSpec((D_in, H), lambda i: (0, 0)),           # W1 (resident)
            pl.BlockSpec((1, H), lambda i: (0, 0)),              # b1
            pl.BlockSpec((H, H), lambda i: (0, 0)),              # W2 (resident)
            pl.BlockSpec((1, H), lambda i: (0, 0)),              # b2
            pl.BlockSpec((1, H), lambda i: (0, 0)),              # w3 (row form)
            pl.BlockSpec(memory_space=pltpu.MemorySpace.SMEM),   # b3 scalar
        ],
        out_specs=pl.BlockSpec((TM, 1), lambda i: (i, 0)),
        compiler_params=pltpu.CompilerParams(
            dimension_semantics=("parallel",),
            vmem_limit_bytes=vmem_limit),
    )(x, w1, b1, w2, b2, w3, b3)
    return out[:B]


def init_critic_params(key, state_size, action_size, hidden=128):
    """Deterministic init matching the nn.Linear shapes of Critic.__init__.
    All weights stored (in_features, out_features); fc3 weight kept as a (1,H)
    row; fc3 bias as a (1,) scalar for SMEM."""
    d_in = state_size + action_size
    ks = jax.random.split(key, 6)

    def uniform(k, shape, fan_in):
        bound = 1.0 / jnp.sqrt(fan_in)
        return jax.random.uniform(k, shape, jnp.float32, -bound, bound)

    w1 = uniform(ks[0], (d_in, hidden), d_in)
    b1 = uniform(ks[1], (1, hidden), d_in)
    w2 = uniform(ks[2], (hidden, hidden), hidden)
    b2 = uniform(ks[3], (1, hidden), hidden)
    w3 = uniform(ks[4], (1, hidden), hidden)      # row form of fc3.weight
    b3 = uniform(ks[5], (1,), hidden)
    return (w1, b1, w2, b2, w3, b3)


def params_to_bf16(params):
    """bf16 weights (MXU-friendly on v6e/v7x); biases stay f32 for the f32 accum."""
    w1, b1, w2, b2, w3, b3 = params
    bf = jnp.bfloat16
    return (w1.astype(bf), b1, w2.astype(bf), b2, w3.astype(bf), b3)


def critic_reference(state, action, params):
    """Plain-JAX reference with the same semantics as the torch module (f32)."""
    if state.ndim == 1:
        state = state[None, :]
    if action.ndim == 1:
        action = action[None, :]
    w1, b1, w2, b2, w3, b3 = params
    x = jnp.concatenate([state, action], axis=1).astype(jnp.float32)
    h1 = jnp.maximum(x @ w1.astype(jnp.float32) + b1.astype(jnp.float32), 0.0)
    h2 = jnp.maximum(h1 @ w2.astype(jnp.float32) + b2.astype(jnp.float32), 0.0)
    return h2 @ w3.astype(jnp.float32).T + b3.astype(jnp.float32)


if __name__ == "__main__":
    state_size, action_size, batch = 8, 4, 2

    key = jax.random.PRNGKey(0)
    kp, ks, ka = jax.random.split(key, 3)

    params = init_critic_params(kp, state_size, action_size)
    state = jax.random.normal(ks, (batch, state_size), jnp.float32)
    action = jax.random.normal(ka, (batch, action_size), jnp.float32)

    # 1) Small-batch f32 path (single grid step).
    value = critic_forward(state, action, params)
    jax.block_until_ready(value)
    ref = critic_reference(state, action, params)
    assert value.shape == (batch, 1)
    assert jnp.allclose(value, ref, atol=1e-5, rtol=1e-5)

    # 2) Medium batch, default tile: exercises the forced 2-step grid
    #    (v7x megacore sharding) and minimal row padding (B=300 -> 304).
    B2 = 300
    ks2, ka2 = jax.random.split(jax.random.PRNGKey(1), 2)
    state2 = jax.random.normal(ks2, (B2, state_size), jnp.float32)
    action2 = jax.random.normal(ka2, (B2, action_size), jnp.float32)
    value2 = critic_forward(state2, action2, params)
    jax.block_until_ready(value2)
    ref2 = critic_reference(state2, action2, params)
    assert value2.shape == (B2, 1)
    assert jnp.allclose(value2, ref2, atol=1e-4, rtol=1e-4)

    # 3) Multi-step grid correctness coverage (small explicit tile, not a benchmark).
    value3 = critic_forward(state2, action2, params, tm=128)
    jax.block_until_ready(value3)
    assert jnp.allclose(value3, ref2, atol=1e-4, rtol=1e-4)

    # 4) bf16 weight/activation path (f32 MXU accumulation) — looser tolerance.
    value_bf16 = critic_forward(state, action, params_to_bf16(params))
    jax.block_until_ready(value_bf16)
    assert value_bf16.shape == (batch, 1)
    assert jnp.allclose(value_bf16, ref, atol=1e-1, rtol=1e-1)

    print("KERNEL_OK")
</pallas_src>

<mosaic_0001>
module attributes {stable_mosaic.version = 11 : i64} {
  func.func @critic_kernel(%arg0: i32, %arg1: memref<8x12xf32, #tpu.memory_space<vmem>>, %arg2: memref<12x128xf32, #tpu.memory_space<vmem>>, %arg3: memref<1x128xf32, #tpu.memory_space<vmem>>, %arg4: memref<128x128xf32, #tpu.memory_space<vmem>>, %arg5: memref<1x128xf32, #tpu.memory_space<vmem>>, %arg6: memref<1x128xf32, #tpu.memory_space<vmem>>, %arg7: memref<1xf32, #tpu.memory_space<smem>>, %arg8: memref<8x1xf32, #tpu.memory_space<vmem>>) attributes {dimension_semantics = [#tpu.dimension_semantics<parallel>], iteration_bounds = array<i64: 1>, scalar_prefetch = 0 : i64, scratch_operands = 0 : i64, tpu.core_type = #tpu.core_type<tc>, window_params = [{transform_indices = @transform_0, window_bounds = array<i64: 8, 12>}, {pipeline_mode = #tpu.pipeline_mode<synchronous>, transform_indices = @transform_1, window_bounds = array<i64: 12, 128>}, {pipeline_mode = #tpu.pipeline_mode<synchronous>, transform_indices = @transform_2, window_bounds = array<i64: 1, 128>}, {pipeline_mode = #tpu.pipeline_mode<synchronous>, transform_indices = @transform_3, window_bounds = array<i64: 128, 128>}, {pipeline_mode = #tpu.pipeline_mode<synchronous>, transform_indices = @transform_4, window_bounds = array<i64: 1, 128>}, {pipeline_mode = #tpu.pipeline_mode<synchronous>, transform_indices = @transform_5, window_bounds = array<i64: 1, 128>}, {transform_indices = @transform_6, window_bounds = array<i64: 1>}, {transform_indices = @transform_7, window_bounds = array<i64: 8, 1>}]} {
    %c0 = arith.constant 0 : index
    %c0_0 = arith.constant 0 : index
    %0 = vector.load %arg1[%c0, %c0_0] : memref<8x12xf32, #tpu.memory_space<vmem>>, vector<8x12xf32>
    %c0_1 = arith.constant 0 : index
    %c0_2 = arith.constant 0 : index
    %1 = vector.load %arg2[%c0_1, %c0_2] : memref<12x128xf32, #tpu.memory_space<vmem>>, vector<12x128xf32>
    %cst = arith.constant dense<0.000000e+00> : vector<8x128xf32>
    %2 = tpu.matmul %0, %1, %cst {dimension_numbers = #tpu.dot_dimension_numbers<[1], [0], [0], [1], [0, 0, 1, 1], [], []>} : vector<8x12xf32>, vector<12x128xf32>, vector<8x128xf32> -> vector<8x128xf32>
    %c0_3 = arith.constant 0 : index
    %c0_4 = arith.constant 0 : index
    %3 = vector.load %arg3[%c0_3, %c0_4] : memref<1x128xf32, #tpu.memory_space<vmem>>, vector<1x128xf32>
    %4 = vector.broadcast %3 : vector<1x128xf32> to vector<8x128xf32>
    %5 = arith.addf %2, %4 : vector<8x128xf32>
    %cst_5 = arith.constant 0.000000e+00 : f32
    %6 = vector.broadcast %cst_5 : f32 to vector<8x128xf32>
    %7 = arith.maximumf %5, %6 : vector<8x128xf32>
    %c0_6 = arith.constant 0 : index
    %c0_7 = arith.constant 0 : index
    %8 = vector.load %arg4[%c0_6, %c0_7] : memref<128x128xf32, #tpu.memory_space<vmem>>, vector<128x128xf32>
    %cst_8 = arith.constant dense<0.000000e+00> : vector<8x128xf32>
    %9 = tpu.matmul %7, %8, %cst_8 {dimension_numbers = #tpu.dot_dimension_numbers<[1], [0], [0], [1], [0, 0, 1, 1], [], []>} : vector<8x128xf32>, vector<128x128xf32>, vector<8x128xf32> -> vector<8x128xf32>
    %c0_9 = arith.constant 0 : index
    %c0_10 = arith.constant 0 : index
    %10 = vector.load %arg5[%c0_9, %c0_10] : memref<1x128xf32, #tpu.memory_space<vmem>>, vector<1x128xf32>
    %11 = vector.broadcast %10 : vector<1x128xf32> to vector<8x128xf32>
    %12 = arith.addf %9, %11 : vector<8x128xf32>
    %cst_11 = arith.constant 0.000000e+00 : f32
    %13 = vector.broadcast %cst_11 : f32 to vector<8x128xf32>
    %14 = arith.maximumf %12, %13 : vector<8x128xf32>
    %c0_12 = arith.constant 0 : index
    %c0_13 = arith.constant 0 : index
    %15 = vector.load %arg6[%c0_12, %c0_13] : memref<1x128xf32, #tpu.memory_space<vmem>>, vector<1x128xf32>
    %16 = vector.broadcast %15 : vector<1x128xf32> to vector<8x128xf32>
    %17 = arith.mulf %14, %16 : vector<8x128xf32>
    %cst_14 = arith.constant dense<0.000000e+00> : vector<8xf32>
    %18 = vector.multi_reduction <add>, %17, %cst_14 [1] : vector<8x128xf32> to vector<8xf32>
    %19 = vector.shape_cast %18 : vector<8xf32> to vector<8x1xf32>
    %c0_15 = arith.constant 0 : index
    %20 = memref.load %arg7[%c0_15] : memref<1xf32, #tpu.memory_space<smem>>
    %21 = vector.broadcast %20 : f32 to vector<8x1xf32>
    %22 = arith.addf %19, %21 : vector<8x1xf32>
    %c0_16 = arith.constant 0 : index
    %c0_17 = arith.constant 0 : index
    %23 = vector.load %arg8[%c0_16, %c0_17] : memref<8x1xf32, #tpu.memory_space<vmem>>, vector<8x1xf32>
    tpu.vector_store %arg8[%c0_16, %c0_17], %22 {strides = array<i32>} : memref<8x1xf32, #tpu.memory_space<vmem>>, vector<8x1xf32>,
    return
  }
  func.func @transform_0(%arg0: i32) -> (i32, i32) {
    %c0_i32 = arith.constant 0 : i32
    %c0_i32_0 = arith.constant 0 : i32
    return %arg0, %c0_i32 : i32, i32
  }
  func.func @transform_1(%arg0: i32) -> (i32, i32) {
    %c0_i32 = arith.constant 0 : i32
    %c0_i32_0 = arith.constant 0 : i32
    %c0_i32_1 = arith.constant 0 : i32
    return %c0_i32, %c0_i32_0 : i32, i32
  }
  func.func @transform_2(%arg0: i32) -> (i32, i32) {
    %c0_i32 = arith.constant 0 : i32
    %c0_i32_0 = arith.constant 0 : i32
    %c0_i32_1 = arith.constant 0 : i32
    return %c0_i32, %c0_i32_0 : i32, i32
  }
  func.func @transform_3(%arg0: i32) -> (i32, i32) {
    %c0_i32 = arith.constant 0 : i32
    %c0_i32_0 = arith.constant 0 : i32
    %c0_i32_1 = arith.constant 0 : i32
    return %c0_i32, %c0_i32_0 : i32, i32
  }
  func.func @transform_4(%arg0: i32) -> (i32, i32) {
    %c0_i32 = arith.constant 0 : i32
    %c0_i32_0 = arith.constant 0 : i32
    %c0_i32_1 = arith.constant 0 : i32
    return %c0_i32, %c0_i32_0 : i32, i32
  }
  func.func @transform_5(%arg0: i32) -> (i32, i32) {
    %c0_i32 = arith.constant 0 : i32
    %c0_i32_0 = arith.constant 0 : i32
    %c0_i32_1 = arith.constant 0 : i32
    return %c0_i32, %c0_i32_0 : i32, i32
  }
  func.func @transform_6(%arg0: i32) -> i32 {
    %c0_i32 = arith.constant 0 : i32
    %c0_i32_0 = arith.constant 0 : i32
    return %c0_i32 : i32
  }
  func.func @transform_7(%arg0: i32) -> (i32, i32) {
    %c0_i32 = arith.constant 0 : i32
    %c0_i32_0 = arith.constant 0 : i32
    return %arg0, %c0_i32 : i32, i32
  }
}

</mosaic_0001>

<llo_original>
// kernel: tpu_custom_call.1
$region0: #{tpu_custom_call.1}
  #allocation0 [shape = 'u32[]', space=smem, size = 0x4, offset = 0x4, fixed_abs, tag = 'smem constant byte address 0x4 - core index']
  #allocation1 [shape = 'u32[144,128]{1,0:T(1,128)}', space=vmem, size = 0x12000, scoped, tag = 'internal scratch']
  #allocation2 [shape = 'f32[1]{0:T(128)S(6)}', space=smem, size = 0x200, scoped, tag = 'scoped memory for tpu_custom_call.1']
  %s0 = inlined_call_operand.hbm [shape: f32[8,12], index: 0, kind: input, shape index: {}]
  %s1 = inlined_call_operand.hbm [shape: f32[12,128], index: 1, kind: input, shape index: {}]
  %s2 = inlined_call_operand.vmem [shape: f32[1,128], index: 2, kind: input, shape index: {}]
  %s3 = inlined_call_operand.hbm [shape: f32[128,128], index: 3, kind: input, shape index: {}]
  %s4 = inlined_call_operand.vmem [shape: f32[1,128], index: 4, kind: input, shape index: {}]
  %s5 = inlined_call_operand.vmem [shape: f32[1,128], index: 5, kind: input, shape index: {}]
  %s6 = inlined_call_operand.<no memory space> [shape: f32[1], index: 6, kind: input, shape index: {}]
  %s7 = inlined_call_operand.vmem [shape: f32[8,1], index: 7, kind: output, shape index: {}]
  %s8 = sld [smem:[#allocation0]]
  $region50: #{tpu_custom_call.1} parent=0
    _
  %s10 = ssub.s32 1, %s8
  %s11 = scalar_select 0, %s10, %s8
  %12 = sst [smem:[#allocation2]] %s6
  $region1: #{tpu_custom_call.1} parent=0
    #allocation3 [shape = 'u8[4096]{0}', space=vmem, size = 0x1000, scoped, tag = 'input window, operand 0, single buffered']
    #allocation4 [shape = 's32[1]{0}', space=sflag, size = 0x4, scoped, tag = 'scoped memory for tpu_custom_call.1']
    #allocation5 [shape = 'u8[8192]{0}', space=vmem, size = 0x2000, scoped, tag = 'input window, operand 1, single buffered']
    #allocation6 [shape = 's32[1]{0}', space=sflag, size = 0x4, scoped, tag = 'scoped memory for tpu_custom_call.1']
    #allocation7 [shape = 'u8[65536]{0}', space=vmem, size = 0x10000, scoped, tag = 'input window, operand 3, single buffered']
    %13 = vsyncpa [#allocation4], 0
    %14 = vsyncpa [#allocation6], 0
    // Predicated region
    $region2: #{tpu_custom_call.1} parent=1 // pred_check
      _
    $region3: #{tpu_custom_call.1} parent=1 // pred_check_branch
      %16 = sbr.rel (0) target = $region5
    $region4: #{tpu_custom_call.1} parent=1 // pred_region
      %s18 = ssub.s32 128, 128
      %19 = vsyncadd [#allocation4], %s18
      %s21 = sshll.u32 [#allocation3], 4
      %s22 = int_to_ptr.vmem [resolvable:$true] %s21
      %24 = dma.hbm_to_vmem [thread:$0]  %s0, 128, %s22, [#allocation4]
    $region5: #{tpu_custom_call.1} parent=1 // pred_fallthru
      _
    // Predicated region
    $region6: #{tpu_custom_call.1} parent=1 // pred_check
      _
    $region7: #{tpu_custom_call.1} parent=1 // pred_check_branch
      %26 = sbr.rel (0) target = $region9
    $region8: #{tpu_custom_call.1} parent=1 // pred_region
      %s28 = ssub.s32 256, 256
      %29 = vsyncadd [#allocation6], %s28
      %s30 = sshll.u32 [#allocation5], 4
      %s31 = int_to_ptr.vmem [resolvable:$true] %s30
      %36 = dma.hbm_to_vmem [thread:$0]  %s1, 256, %s31, [#allocation6], 128, 128, 8
    $region9: #{tpu_custom_call.1} parent=1 // pred_fallthru
      _
    // Predicated region
    $region10: #{tpu_custom_call.1} parent=1 // pred_check
      _
    $region11: #{tpu_custom_call.1} parent=1 // pred_check_branch
      %38 = sbr.rel (0) target = $region13
    $region12: #{tpu_custom_call.1} parent=1 // pred_region
      _
    $region13: #{tpu_custom_call.1} parent=1 // pred_fallthru
      _
    // Predicated region
    $region14: #{tpu_custom_call.1} parent=1 // pred_check
      _
    $region15: #{tpu_custom_call.1} parent=1 // pred_check_branch
      %40 = sbr.rel (0) target = $region17
    $region16: #{tpu_custom_call.1} parent=1 // pred_region
      %s42 = ssub.s32 2048, 2048
      %43 = vsyncadd [#allocation6], %s42
      %s44 = sshll.u32 [#allocation7], 4
      %s45 = int_to_ptr.vmem [resolvable:$true] %s44
      %50 = dma.hbm_to_vmem [thread:$0]  %s3, 2048, %s45, [#allocation6], 128, 128, 8
    $region17: #{tpu_custom_call.1} parent=1 // pred_fallthru
      _
    // Predicated region
    $region18: #{tpu_custom_call.1} parent=1 // pred_check
      _
    $region19: #{tpu_custom_call.1} parent=1 // pred_check_branch
      %52 = sbr.rel (0) target = $region21
    $region20: #{tpu_custom_call.1} parent=1 // pred_region
      _
    $region21: #{tpu_custom_call.1} parent=1 // pred_fallthru
      _
    // Predicated region
    $region22: #{tpu_custom_call.1} parent=1 // pred_check
      _
    $region23: #{tpu_custom_call.1} parent=1 // pred_check_branch
      %54 = sbr.rel (0) target = $region25
    $region24: #{tpu_custom_call.1} parent=1 // pred_region
      _
    $region25: #{tpu_custom_call.1} parent=1 // pred_fallthru
      _
    // Predicated region
    $region26: #{tpu_custom_call.1} parent=1 // pred_check
      _
    $region27: #{tpu_custom_call.1} parent=1 // pred_check_branch
      %56 = sbr.rel (0) target = $region29
    $region28: #{tpu_custom_call.1} parent=1 // pred_region
      _
    $region29: #{tpu_custom_call.1} parent=1 // pred_fallthru
      _
    // Predicated region
    $region30: #{tpu_custom_call.1} parent=1 // pred_check
      _
    $region31: #{tpu_custom_call.1} parent=1 // pred_check_branch
      %58 = sbr.rel (0) target = $region33
    $region32: #{tpu_custom_call.1} parent=1 // pred_region
      %59 = dma.done [#allocation4], 128
    $region33: #{tpu_custom_call.1} parent=1 // pred_fallthru
      _
    // Predicated region
    $region34: #{tpu_custom_call.1} parent=1 // pred_check
      _
    $region35: #{tpu_custom_call.1} parent=1 // pred_check_branch
      %61 = sbr.rel (0) target = $region37
    $region36: #{tpu_custom_call.1} parent=1 // pred_region
      %62 = dma.done [#allocation6], 256
    $region37: #{tpu_custom_call.1} parent=1 // pred_fallthru
      _
    // Predicated region
    $region38: #{tpu_custom_call.1} parent=1 // pred_check
      _
    $region39: #{tpu_custom_call.1} parent=1 // pred_check_branch
      %64 = sbr.rel (0) target = $region41
    $region40: #{tpu_custom_call.1} parent=1 // pred_region
      %65 = dma.done [#allocation6], 2048
    $region41: #{tpu_custom_call.1} parent=1 // pred_fallthru
      _
    %v66 = vld [vmem:[#allocation3] sm:$0xff]
    %v67 = vld [vmem:[#allocation5] sm:$0xff]
    %v68 = vld [vmem:[#allocation5 + $0x8] sm:$0xf]
    %v69 = vld [vmem:[%s2] sm:$0x1]
    %v71 = vlaneseq
    %v72 = vshrl.u32 %v71, 7
    %v73 = vsub.s32 0, %v72
    %v74 = vrot.slane %v69, %v73
    %vm76 = vcmask 97280
    %v78 = vsel %vm76, %v66, 0
    %vm80 = vcmask 1043456
    %v82 = vsel %vm80, %v68, 0
    %84 = vmatprep.subr.mxu0 0.0
    %85 = vmatpush1.msra.mxu0 %v67
    %86 = vmatprep.subr.mxu0 0.0
    %87 = vmatpush1.msra.mxu0 %v82
    %88 = vmatprep.subr.mxu0 0.0
    %89 = vmatpush1.msra.mxu0 0.0
    %90 = vmatprep.subr.mxu0 0.0
    %91 = vmatpush1.msra.mxu0 0.0
    %92 = vmatprep.subr.mxu0 0.0
    %93 = vmatpush1.msra.mxu0 0.0
    %94 = vmatprep.subr.mxu0 0.0
    %95 = vmatpush1.msra.mxu0 0.0
    %96 = vmatprep.subr.mxu0 0.0
    %97 = vmatpush1.msra.mxu0 0.0
    %98 = vmatprep.subr.mxu0 0.0
    %99 = vmatpush1.msra.mxu0 0.0
    %100 = vmatprep.subr.mxu0 0.0
    %101 = vmatpush1.msra.mxu0 0.0
    %102 = vmatprep.subr.mxu0 0.0
    %103 = vmatpush1.msra.mxu0 0.0
    %104 = vmatprep.subr.mxu0 0.0
    %105 = vmatpush1.msra.mxu0 0.0
    %106 = vmatprep.subr.mxu0 0.0
    %107 = vmatpush1.msra.mxu0 0.0
    %108 = vmatprep.subr.mxu0 0.0
    %109 = vmatpush1.msra.mxu0 0.0
    %110 = vmatprep.subr.mxu0 0.0
    %111 = vmatpush1.msra.mxu0 0.0
    %112 = vmatprep.subr.mxu0 0.0
    %113 = vmatpush1.msra.mxu0 0.0
    %114 = vmatprep.subr.mxu0 0.0
    %115 = vmatpush1.msra.mxu0 0.0
    %116 = vmatprep.subr.mxu0 0.0
    %117 = vmatpush1.msra.mxu0 0.0
    %118 = vmatprep.subr.mxu0 0.0
    %119 = vmatpush1.msra.mxu0 0.0
    %120 = vmatprep.subr.mxu0 0.0
    %121 = vmatpush1.msra.mxu0 0.0
    %122 = vmatprep.subr.mxu0 0.0
    %123 = vmatpush1.msra.mxu0 0.0
    %124 = vmatprep.subr.mxu0 0.0
    %125 = vmatpush1.msra.mxu0 0.0
    %126 = vmatprep.subr.mxu0 0.0
    %127 = vmatpush1.msra.mxu0 0.0
    %128 = vmatprep.subr.mxu0 0.0
    %129 = vmatpush1.msra.mxu0 0.0
    %130 = vmatprep.subr.mxu0 0.0
    %131 = vmatpush1.msra.mxu0 0.0
    %132 = vmatprep.subr.mxu0 0.0
    %133 = vmatpush1.msra.mxu0 0.0
    %134 = vmatprep.subr.mxu0 0.0
    %135 = vmatpush1.msra.mxu0 0.0
    %136 = vmatprep.subr.mxu0 0.0
    %137 = vmatpush1.msra.mxu0 0.0
    %138 = vmatprep.subr.mxu0 0.0
    %139 = vmatpush1.msra.mxu0 0.0
    %140 = vmatprep.subr.mxu0 0.0
    %141 = vmatpush1.msra.mxu0 0.0
    %142 = vmatprep.subr.mxu0 0.0
    %143 = vmatpush1.msra.mxu0 0.0
    %144 = vmatprep.subr.mxu0 0.0
    %145 = vmatpush1.msra.mxu0 0.0
    %146 = vmatprep.subr.mxu0 0.0
    %147 = vmatpush1.msra.mxu0 0.0
    %148 = vmatprep.mubr.f32.mxu0 0.0
    %149 = vmatmul.mubr.f32.gmra.mrb[0].mxu0 %v78
    %v150 = vpop.f32.mrb[0].mxu0
    %v151 = vadd.f32 %v74, %v150
    %v152 = vpop.f32.mrb[0].mxu0
    %153 = vdwg.mxu0
    %v154 = vmax.f32 %v151, 0.0
    %v155 = vld [vmem:[#allocation7] sm:$0xff]
    %v156 = vld [vmem:[#allocation7 + $0x8] sm:$0xff]
    %v157 = vld [vmem:[#allocation7 + $0x10] sm:$0xff]
    %v158 = vld [vmem:[#allocation7 + $0x18] sm:$0xff]
    %v159 = vld [vmem:[#allocation7 + $0x20] sm:$0xff]
    %v160 = vld [vmem:[#allocation7 + $0x28] sm:$0xff]
    %v161 = vld [vmem:[#allocation7 + $0x30] sm:$0xff]
    %v162 = vld [vmem:[#allocation7 + $0x38] sm:$0xff]
    %v163 = vld [vmem:[#allocation7 + $0x40] sm:$0xff]
    %v164 = vld [vmem:[#allocation7 + $0x48] sm:$0xff]
    %v165 = vld [vmem:[#allocation7 + $0x50] sm:$0xff]
    %v166 = vld [vmem:[#allocation7 + $0x58] sm:$0xff]
    %v167 = vld [vmem:[#allocation7 + $0x60] sm:$0xff]
    %v168 = vld [vmem:[#allocation7 + $0x68] sm:$0xff]
    %v169 = vld [vmem:[#allocation7 + $0x70] sm:$0xff]
    %v170 = vld [vmem:[#allocation7 + $0x78] sm:$0xff]
    %v171 = vld [vmem:[%s4] sm:$0x1]
    %v173 = vlaneseq
    %v174 = vshrl.u32 %v173, 7
    %v175 = vsub.s32 0, %v174
    %v176 = vrot.slane %v171, %v175
    %178 = vmatprep.subr.mxu0 0.0
    %179 = vmatpush1.msra.mxu0 %v155
    %180 = vmatprep.subr.mxu0 0.0
    %181 = vmatpush1.msra.mxu0 %v156
    %182 = vmatprep.subr.mxu0 0.0
    %183 = vmatpush1.msra.mxu0 %v157
    %184 = vmatprep.subr.mxu0 0.0
    %185 = vmatpush1.msra.mxu0 %v158
    %186 = vmatprep.subr.mxu0 0.0
    %187 = vmatpush1.msra.mxu0 %v159
    %188 = vmatprep.subr.mxu0 0.0
    %189 = vmatpush1.msra.mxu0 %v160
    %190 = vmatprep.subr.mxu0 0.0
    %191 = vmatpush1.msra.mxu0 %v161
    %192 = vmatprep.subr.mxu0 0.0
    %193 = vmatpush1.msra.mxu0 %v162
    %194 = vmatprep.subr.mxu0 0.0
    %195 = vmatpush1.msra.mxu0 %v163
    %196 = vmatprep.subr.mxu0 0.0
    %197 = vmatpush1.msra.mxu0 %v164
    %198 = vmatprep.subr.mxu0 0.0
    %199 = vmatpush1.msra.mxu0 %v165
    %200 = vmatprep.subr.mxu0 0.0
    %201 = vmatpush1.msra.mxu0 %v166
    %202 = vmatprep.subr.mxu0 0.0
    %203 = vmatpush1.msra.mxu0 %v167
    %204 = vmatprep.subr.mxu0 0.0
    %205 = vmatpush1.msra.mxu0 %v168
    %206 = vmatprep.subr.mxu0 0.0
    %207 = vmatpush1.msra.mxu0 %v169
    %208 = vmatprep.subr.mxu0 0.0
    %209 = vmatpush1.msra.mxu0 %v170
    %210 = vmatprep.subr.mxu0 0.0
    %211 = vmatpush1.msra.mxu0 0.0
    %212 = vmatprep.subr.mxu0 0.0
    %213 = vmatpush1.msra.mxu0 0.0
    %214 = vmatprep.subr.mxu0 0.0
    %215 = vmatpush1.msra.mxu0 0.0
    %216 = vmatprep.subr.mxu0 0.0
    %217 = vmatpush1.msra.mxu0 0.0
    %218 = vmatprep.subr.mxu0 0.0
    %219 = vmatpush1.msra.mxu0 0.0
    %220 = vmatprep.subr.mxu0 0.0
    %221 = vmatpush1.msra.mxu0 0.0
    %222 = vmatprep.subr.mxu0 0.0
    %223 = vmatpush1.msra.mxu0 0.0
    %224 = vmatprep.subr.mxu0 0.0
    %225 = vmatpush1.msra.mxu0 0.0
    %226 = vmatprep.subr.mxu0 0.0
    %227 = vmatpush1.msra.mxu0 0.0
    %228 = vmatprep.subr.mxu0 0.0
    %229 = vmatpush1.msra.mxu0 0.0
    %230 = vmatprep.subr.mxu0 0.0
    %231 = vmatpush1.msra.mxu0 0.0
    %232 = vmatprep.subr.mxu0 0.0
    %233 = vmatpush1.msra.mxu0 0.0
    %234 = vmatprep.subr.mxu0 0.0
    %235 = vmatpush1.msra.mxu0 0.0
    %236 = vmatprep.subr.mxu0 0.0
    %237 = vmatpush1.msra.mxu0 0.0
    %238 = vmatprep.subr.mxu0 0.0
    %239 = vmatpush1.msra.mxu0 0.0
    %240 = vmatprep.subr.mxu0 0.0
    %241 = vmatpush1.msra.mxu0 0.0
    %242 = vmatprep.mubr.f32.mxu0 0.0
    %243 = vmatmul.mubr.f32.gmra.mrb[0].mxu0 %v154
    %v244 = vpop.f32.mrb[0].mxu0
    %v245 = vadd.f32 %v176, %v244
    %v246 = vpop.f32.mrb[0].mxu0
    %247 = vdwg.mxu0
    %v248 = vmax.f32 %v245, 0.0
    %v249 = vld [vmem:[%s5] sm:$0x1]
    %v251 = vlaneseq
    %v252 = vshrl.u32 %v251, 7
    %v253 = vsub.s32 0, %v252
    %v254 = vrot.slane %v249, %v253
    %v256 = vmul.f32 %v248, %v254
    %257 = vadd.xlane.f32.xlu0 %v256
    %v258 = vpop.xlane.xlu0 %257
    %s259 = sld [smem:[#allocation2]]
    %v260 = vstv %s259
    %v261 = vadd.f32 %v258, %v260
    %vm262 = vcmask 7168
    %263 = vst.msk [vmem:[%s7] sm:$0xff] %vm262, %v261
    // Predicated region
    $region42: #{tpu_custom_call.1} parent=1 // pred_check
      _
    $region43: #{tpu_custom_call.1} parent=1 // pred_check_branch
      %265 = sbr.rel (0) target = $region45
    $region44: #{tpu_custom_call.1} parent=1 // pred_region
      _
    $region45: #{tpu_custom_call.1} parent=1 // pred_fallthru
      _
    // Predicated region
    $region46: #{tpu_custom_call.1} parent=1 // pred_check
      _
    $region47: #{tpu_custom_call.1} parent=1 // pred_check_branch
      %267 = sbr.rel (0) target = $region49
    $region48: #{tpu_custom_call.1} parent=1 // pred_region
      _
    $region49: #{tpu_custom_call.1} parent=1 // pred_fallthru
      _
    %268 = vsyncpa [#allocation4], 1
    %269 = vsyncpa [#allocation6], 1

</llo_original>
